<compile_context>
chip_gen: v7x
topology: tpu7x:2x2x1
jax: 0.10.0
libtpu: 0.0.40
codegen_flags: <defaults>
</compile_context>

<pallas_src>
import functools

import jax
import jax.numpy as jnp
from jax.experimental import pallas as pl
from jax.experimental.pallas import tpu as pltpu


# ------------------------------- kernel ------------------------------------


def _qnet_kernel(x_ref, w1_ref, w_ref, b_ref, o_ref):
    """One batch tile of the 4-layer MLP; all operands VMEM-resident.

    x_ref : (tile_B, 4)  f32 input tile (natural 4-wide feature dim, no pad)
    w1_ref: (4, D)       f32 layer-1 weight (zero-padded to D lanes)
    w_ref : (3, D, D)    f32 layers 2..4 stacked weights (zero-padded)
    b_ref : (8, D)       f32 biases (rows 0..3 = layers 1..4, rest zero)
    o_ref : (tile_B, D)  f32 lane-dense output tile (trimmed in the wrapper)
    """
    # layer 1: (tile_B, 4) @ (4, D)  -- MXU pads the tiny K internally
    h = jnp.dot(x_ref[...], w1_ref[...], preferred_element_type=jnp.float32)
    h = jnp.maximum(h + b_ref[0:1, :], 0.0)
    for i in range(2):                                   # hidden layers 2, 3
        a = jnp.dot(h, w_ref[i], preferred_element_type=jnp.float32)
        h = jnp.maximum(a + b_ref[i + 1:i + 2, :], 0.0)
    out = jnp.dot(h, w_ref[2], preferred_element_type=jnp.float32)
    o_ref[...] = (out + b_ref[3:4, :]).astype(o_ref.dtype)


# ------------------------------ wrapper -------------------------------------


def _round_up(x, m):
    return ((x + m - 1) // m) * m


def _cdiv(a, b):
    return -(-a // b)


def prepare_params(params):
    """One-time packing of the raw (in, out)-layout params into kernel form.

    Done outside the per-step forward so the padded copies are reused across
    calls.  W1 stays a separate (4, D) operand (the input keeps its natural
    4-wide feature dim); W2..W4 are stacked into one (3, D, D) array.
    """
    d_in, d_hid = params["W1"].shape
    d_out = params["W4"].shape[1]
    D = _round_up(max(d_hid, d_out), 128)

    def pad_to(w, rows, cols):
        r, c = w.shape
        return jnp.pad(w.astype(jnp.float32), ((0, rows - r), (0, cols - c)))

    w1 = pad_to(params["W1"], d_in, D)                                  # (4, D)
    w_stack = jnp.stack([pad_to(params[f"W{i}"], D, D) for i in (2, 3, 4)])

    b_stack = jnp.zeros((8, D), jnp.float32)                            # (8, D)
    for i in range(4):
        b = params[f"b{i + 1}"].astype(jnp.float32)
        b_stack = b_stack.at[i, : b.shape[0]].set(b)

    return {"w1": w1, "w": w_stack, "b": b_stack,
            "d_in": d_in, "d_out": d_out}


def _choose_tiling(B):
    """Return (tile_B, num_tiles).

    * B <= 512: a single grid step covering the exact batch (block shape ==
      full array shape, so no batch padding and no pad op at all).
    * B  > 512: ~512-row tiles, rounded to 8 sublanes, with an EVEN tile count
      so v7x's two TensorCores get balanced work (harmless on v5e/v6e).
    """
    B = max(int(B), 1)
    if B <= 512:
        return B, 1
    nb = _cdiv(B, 512)
    if nb % 2:
        nb += 1
    tile_B = _round_up(_cdiv(B, nb), 8)
    nb = _cdiv(B, tile_B)
    return tile_B, nb


@functools.partial(jax.jit, static_argnames=("d_out", "single_buffer_weights"))
def qnet_forward(state, w1, w_stack, b_stack, *, d_out,
                 single_buffer_weights=True):
    """state: (B, 4) f32.  w1/w_stack/b_stack from prepare_params."""
    B, d_in = state.shape
    D = w_stack.shape[-1]

    tile_B, nb = _choose_tiling(B)
    Bp = tile_B * nb

    x = state.astype(jnp.float32)
    if Bp != B:
        # Only the (tiny) batch axis of the (B, 4) array is ever padded; the
        # feature axis stays at 4 so there is no 32x-inflated HBM round trip.
        x = jnp.pad(x, ((0, Bp - B), (0, 0)))

    # Weights/biases have constant index_maps (DMA'd once, VMEM-resident);
    # single-buffer them so no second pipeline buffer / prefetch is reserved.
    resident = ({"pipeline_mode": pl.Buffered(1)}
                if single_buffer_weights else {})

    out_p = pl.pallas_call(
        _qnet_kernel,
        out_shape=jax.ShapeDtypeStruct((Bp, D), jnp.float32),
        grid=(nb,),
        in_specs=[
            pl.BlockSpec((tile_B, d_in), lambda i: (i, 0)),          # x tile
            pl.BlockSpec(w1.shape, lambda i: (0, 0), **resident),    # W1
            pl.BlockSpec(w_stack.shape, lambda i: (0, 0, 0), **resident),
            pl.BlockSpec(b_stack.shape, lambda i: (0, 0), **resident),
        ],
        out_specs=pl.BlockSpec((tile_B, D), lambda i: (i, 0)),
        compiler_params=pltpu.CompilerParams(
            dimension_semantics=("parallel",)),
    )(x, w1, w_stack, b_stack)

    return out_p[:B, :d_out]


# --------------------------- init & reference --------------------------------


def init_params(key, n_observations, n_actions, d_in=4):
    """PyTorch-Linear-style uniform(-1/sqrt(fan_in)) init, (in, out) layout."""
    dims = [(d_in, n_observations),
            (n_observations, n_observations),
            (n_observations, n_observations),
            (n_observations, n_actions)]
    params = {}
    for i, (fin, fout) in enumerate(dims, start=1):
        key, kw, kb = jax.random.split(key, 3)
        bound = 1.0 / jnp.sqrt(jnp.float32(fin))
        params[f"W{i}"] = jax.random.uniform(
            kw, (fin, fout), jnp.float32, minval=-bound, maxval=bound)
        params[f"b{i}"] = jax.random.uniform(
            kb, (fout,), jnp.float32, minval=-bound, maxval=bound)
    return params


def qnet_ref(state, params):
    """Pure-JAX f32 reference (mirrors the PyTorch forward exactly)."""
    h = state
    for i in range(1, 4):
        h = jnp.maximum(h @ params[f"W{i}"] + params[f"b{i}"], 0.0)
    return h @ params["W4"] + params["b4"]


# --------------------------------- main --------------------------------------


if __name__ == "__main__":
    key = jax.random.PRNGKey(0)
    k_param, k_state, k_big = jax.random.split(key, 3)

    n_observations = 32   # hidden width per the module's __init__
    n_actions = 8
    batch = 2

    params = init_params(k_param, n_observations, n_actions)
    prepared = prepare_params(params)        # one-time pad + pack (f32)

    def forward(s, single_buffer):
        return qnet_forward(s, prepared["w1"], prepared["w"], prepared["b"],
                            d_out=prepared["d_out"],
                            single_buffer_weights=single_buffer)

    # --- small online-inference batch (single grid step, zero padding) ---
    state = jax.random.normal(k_state, (batch, 4), jnp.float32)
    try:
        out = jax.block_until_ready(forward(state, True))
        single_buffer = True
    except Exception:
        # pl.Buffered(1) unavailable in this JAX build: resident weights fall
        # back to the default double-buffered pipeline (correctness identical).
        single_buffer = False
        out = jax.block_until_ready(forward(state, False))

    ref = qnet_ref(state, params)
    assert out.shape == (batch, n_actions), out.shape
    assert jnp.allclose(out, ref, atol=2e-2, rtol=2e-2), (out, ref)

    # --- replay-buffer-sized batch (tiled grid, even tile count, batch pad) ---
    big_state = jax.random.normal(k_big, (1030, 4), jnp.float32)
    out_big = jax.block_until_ready(forward(big_state, single_buffer))
    ref_big = qnet_ref(big_state, params)
    assert out_big.shape == (1030, n_actions), out_big.shape
    assert jnp.allclose(out_big, ref_big, atol=2e-2, rtol=2e-2)

    print("KERNEL_OK")
</pallas_src>

<mosaic_0001>
module attributes {stable_mosaic.version = 11 : i64} {
  func.func @_qnet_kernel(%arg0: i32, %arg1: memref<2x4xf32, #tpu.memory_space<vmem>>, %arg2: memref<4x128xf32, #tpu.memory_space<vmem>>, %arg3: memref<3x128x128xf32, #tpu.memory_space<vmem>>, %arg4: memref<8x128xf32, #tpu.memory_space<vmem>>, %arg5: memref<2x128xf32, #tpu.memory_space<vmem>>) attributes {dimension_semantics = [#tpu.dimension_semantics<parallel>], iteration_bounds = array<i64: 1>, scalar_prefetch = 0 : i64, scratch_operands = 0 : i64, tpu.core_type = #tpu.core_type<tc>, window_params = [{transform_indices = @transform_0, window_bounds = array<i64: 2, 4>}, {pipeline_mode = #tpu.pipeline_mode<synchronous>, transform_indices = @transform_1, window_bounds = array<i64: 4, 128>}, {pipeline_mode = #tpu.pipeline_mode<synchronous>, transform_indices = @transform_2, window_bounds = array<i64: 3, 128, 128>}, {pipeline_mode = #tpu.pipeline_mode<synchronous>, transform_indices = @transform_3, window_bounds = array<i64: 8, 128>}, {transform_indices = @transform_4, window_bounds = array<i64: 2, 128>}]} {
    %c0 = arith.constant 0 : index
    %c0_0 = arith.constant 0 : index
    %0 = vector.load %arg1[%c0, %c0_0] : memref<2x4xf32, #tpu.memory_space<vmem>>, vector<2x4xf32>
    %c0_1 = arith.constant 0 : index
    %c0_2 = arith.constant 0 : index
    %1 = vector.load %arg2[%c0_1, %c0_2] : memref<4x128xf32, #tpu.memory_space<vmem>>, vector<4x128xf32>
    %cst = arith.constant dense<0.000000e+00> : vector<2x128xf32>
    %2 = tpu.matmul %0, %1, %cst {dimension_numbers = #tpu.dot_dimension_numbers<[1], [0], [0], [1], [0, 0, 1, 1], [], []>} : vector<2x4xf32>, vector<4x128xf32>, vector<2x128xf32> -> vector<2x128xf32>
    %c0_3 = arith.constant 0 : index
    %c0_4 = arith.constant 0 : index
    %3 = vector.load %arg4[%c0_3, %c0_4] : memref<8x128xf32, #tpu.memory_space<vmem>>, vector<1x128xf32>
    %4 = vector.broadcast %3 : vector<1x128xf32> to vector<2x128xf32>
    %5 = arith.addf %2, %4 : vector<2x128xf32>
    %cst_5 = arith.constant 0.000000e+00 : f32
    %6 = vector.broadcast %cst_5 : f32 to vector<2x128xf32>
    %7 = arith.maximumf %5, %6 : vector<2x128xf32>
    %c0_6 = arith.constant 0 : index
    %c0_7 = arith.constant 0 : index
    %c0_8 = arith.constant 0 : index
    %8 = vector.load %arg3[%c0_6, %c0_7, %c0_8] : memref<3x128x128xf32, #tpu.memory_space<vmem>>, vector<1x128x128xf32>
    %9 = vector.shape_cast %8 : vector<1x128x128xf32> to vector<128x128xf32>
    %cst_9 = arith.constant dense<0.000000e+00> : vector<2x128xf32>
    %10 = tpu.matmul %7, %9, %cst_9 {dimension_numbers = #tpu.dot_dimension_numbers<[1], [0], [0], [1], [0, 0, 1, 1], [], []>} : vector<2x128xf32>, vector<128x128xf32>, vector<2x128xf32> -> vector<2x128xf32>
    %c1 = arith.constant 1 : index
    %c0_10 = arith.constant 0 : index
    %11 = vector.load %arg4[%c1, %c0_10] : memref<8x128xf32, #tpu.memory_space<vmem>>, vector<1x128xf32>
    %12 = vector.broadcast %11 : vector<1x128xf32> to vector<2x128xf32>
    %13 = arith.addf %10, %12 : vector<2x128xf32>
    %cst_11 = arith.constant 0.000000e+00 : f32
    %14 = vector.broadcast %cst_11 : f32 to vector<2x128xf32>
    %15 = arith.maximumf %13, %14 : vector<2x128xf32>
    %c1_12 = arith.constant 1 : index
    %c0_13 = arith.constant 0 : index
    %c0_14 = arith.constant 0 : index
    %16 = vector.load %arg3[%c1_12, %c0_13, %c0_14] : memref<3x128x128xf32, #tpu.memory_space<vmem>>, vector<1x128x128xf32>
    %17 = vector.shape_cast %16 : vector<1x128x128xf32> to vector<128x128xf32>
    %cst_15 = arith.constant dense<0.000000e+00> : vector<2x128xf32>
    %18 = tpu.matmul %15, %17, %cst_15 {dimension_numbers = #tpu.dot_dimension_numbers<[1], [0], [0], [1], [0, 0, 1, 1], [], []>} : vector<2x128xf32>, vector<128x128xf32>, vector<2x128xf32> -> vector<2x128xf32>
    %c2 = arith.constant 2 : index
    %c0_16 = arith.constant 0 : index
    %19 = vector.load %arg4[%c2, %c0_16] : memref<8x128xf32, #tpu.memory_space<vmem>>, vector<1x128xf32>
    %20 = vector.broadcast %19 : vector<1x128xf32> to vector<2x128xf32>
    %21 = arith.addf %18, %20 : vector<2x128xf32>
    %cst_17 = arith.constant 0.000000e+00 : f32
    %22 = vector.broadcast %cst_17 : f32 to vector<2x128xf32>
    %23 = arith.maximumf %21, %22 : vector<2x128xf32>
    %c2_18 = arith.constant 2 : index
    %c0_19 = arith.constant 0 : index
    %c0_20 = arith.constant 0 : index
    %24 = vector.load %arg3[%c2_18, %c0_19, %c0_20] : memref<3x128x128xf32, #tpu.memory_space<vmem>>, vector<1x128x128xf32>
    %25 = vector.shape_cast %24 : vector<1x128x128xf32> to vector<128x128xf32>
    %cst_21 = arith.constant dense<0.000000e+00> : vector<2x128xf32>
    %26 = tpu.matmul %23, %25, %cst_21 {dimension_numbers = #tpu.dot_dimension_numbers<[1], [0], [0], [1], [0, 0, 1, 1], [], []>} : vector<2x128xf32>, vector<128x128xf32>, vector<2x128xf32> -> vector<2x128xf32>
    %c3 = arith.constant 3 : index
    %c0_22 = arith.constant 0 : index
    %27 = vector.load %arg4[%c3, %c0_22] : memref<8x128xf32, #tpu.memory_space<vmem>>, vector<1x128xf32>
    %28 = vector.broadcast %27 : vector<1x128xf32> to vector<2x128xf32>
    %29 = arith.addf %26, %28 : vector<2x128xf32>
    %c0_23 = arith.constant 0 : index
    %c0_24 = arith.constant 0 : index
    %30 = vector.load %arg5[%c0_23, %c0_24] : memref<2x128xf32, #tpu.memory_space<vmem>>, vector<2x128xf32>
    tpu.vector_store %arg5[%c0_23, %c0_24], %29 {strides = array<i32>} : memref<2x128xf32, #tpu.memory_space<vmem>>, vector<2x128xf32>,
    return
  }
  func.func @transform_0(%arg0: i32) -> (i32, i32) {
    %c0_i32 = arith.constant 0 : i32
    %c0_i32_0 = arith.constant 0 : i32
    return %arg0, %c0_i32 : i32, i32
  }
  func.func @transform_1(%arg0: i32) -> (i32, i32) {
    %c0_i32 = arith.constant 0 : i32
    %c0_i32_0 = arith.constant 0 : i32
    %c0_i32_1 = arith.constant 0 : i32
    return %c0_i32, %c0_i32_0 : i32, i32
  }
  func.func @transform_2(%arg0: i32) -> (i32, i32, i32) {
    %c0_i32 = arith.constant 0 : i32
    %c0_i32_0 = arith.constant 0 : i32
    %c0_i32_1 = arith.constant 0 : i32
    %c0_i32_2 = arith.constant 0 : i32
    return %c0_i32, %c0_i32_0, %c0_i32_1 : i32, i32, i32
  }
  func.func @transform_3(%arg0: i32) -> (i32, i32) {
    %c0_i32 = arith.constant 0 : i32
    %c0_i32_0 = arith.constant 0 : i32
    %c0_i32_1 = arith.constant 0 : i32
    return %c0_i32, %c0_i32_0 : i32, i32
  }
  func.func @transform_4(%arg0: i32) -> (i32, i32) {
    %c0_i32 = arith.constant 0 : i32
    %c0_i32_0 = arith.constant 0 : i32
    return %arg0, %c0_i32 : i32, i32
  }
}

module attributes {stable_mosaic.version = 11 : i64} {
  func.func @_qnet_kernel(%arg0: i32, %arg1: memref<2x4xf32, #tpu.memory_space<vmem>>, %arg2: memref<4x128xf32, #tpu.memory_space<vmem>>, %arg3: memref<3x128x128xf32, #tpu.memory_space<vmem>>, %arg4: memref<8x128xf32, #tpu.memory_space<vmem>>, %arg5: memref<2x128xf32, #tpu.memory_space<vmem>>) attributes {dimension_semantics = [#tpu.dimension_semantics<parallel>], iteration_bounds = array<i64: 1>, scalar_prefetch = 0 : i64, scratch_operands = 0 : i64, tpu.core_type = #tpu.core_type<tc>, window_params = [{transform_indices = @transform_0, window_bounds = array<i64: 2, 4>}, {pipeline_mode = #tpu.pipeline_mode<synchronous>, transform_indices = @transform_1, window_bounds = array<i64: 4, 128>}, {pipeline_mode = #tpu.pipeline_mode<synchronous>, transform_indices = @transform_2, window_bounds = array<i64: 3, 128, 128>}, {pipeline_mode = #tpu.pipeline_mode<synchronous>, transform_indices = @transform_3, window_bounds = array<i64: 8, 128>}, {transform_indices = @transform_4, window_bounds = array<i64: 2, 128>}]} {
    %c0 = arith.constant 0 : index
    %c0_0 = arith.constant 0 : index
    %0 = vector.load %arg1[%c0, %c0_0] : memref<2x4xf32, #tpu.memory_space<vmem>>, vector<2x4xf32>
    %c0_1 = arith.constant 0 : index
    %c0_2 = arith.constant 0 : index
    %1 = vector.load %arg2[%c0_1, %c0_2] : memref<4x128xf32, #tpu.memory_space<vmem>>, vector<4x128xf32>
    %cst = arith.constant dense<0.000000e+00> : vector<2x128xf32>
    %2 = tpu.matmul %0, %1, %cst {dimension_numbers = #tpu.dot_dimension_numbers<[1], [0], [0], [1], [0, 0, 1, 1], [], []>} : vector<2x4xf32>, vector<4x128xf32>, vector<2x128xf32> -> vector<2x128xf32>
    %c0_3 = arith.constant 0 : index
    %c0_4 = arith.constant 0 : index
    %3 = vector.load %arg4[%c0_3, %c0_4] : memref<8x128xf32, #tpu.memory_space<vmem>>, vector<1x128xf32>
    %4 = vector.broadcast %3 : vector<1x128xf32> to vector<2x128xf32>
    %5 = arith.addf %2, %4 : vector<2x128xf32>
    %cst_5 = arith.constant 0.000000e+00 : f32
    %6 = vector.broadcast %cst_5 : f32 to vector<2x128xf32>
    %7 = arith.maximumf %5, %6 : vector<2x128xf32>
    %c0_6 = arith.constant 0 : index
    %c0_7 = arith.constant 0 : index
    %c0_8 = arith.constant 0 : index
    %8 = vector.load %arg3[%c0_6, %c0_7, %c0_8] : memref<3x128x128xf32, #tpu.memory_space<vmem>>, vector<1x128x128xf32>
    %9 = vector.shape_cast %8 : vector<1x128x128xf32> to vector<128x128xf32>
    %cst_9 = arith.constant dense<0.000000e+00> : vector<2x128xf32>
    %10 = tpu.matmul %7, %9, %cst_9 {dimension_numbers = #tpu.dot_dimension_numbers<[1], [0], [0], [1], [0, 0, 1, 1], [], []>} : vector<2x128xf32>, vector<128x128xf32>, vector<2x128xf32> -> vector<2x128xf32>
    %c1 = arith.constant 1 : index
    %c0_10 = arith.constant 0 : index
    %11 = vector.load %arg4[%c1, %c0_10] : memref<8x128xf32, #tpu.memory_space<vmem>>, vector<1x128xf32>
    %12 = vector.broadcast %11 : vector<1x128xf32> to vector<2x128xf32>
    %13 = arith.addf %10, %12 : vector<2x128xf32>
    %cst_11 = arith.constant 0.000000e+00 : f32
    %14 = vector.broadcast %cst_11 : f32 to vector<2x128xf32>
    %15 = arith.maximumf %13, %14 : vector<2x128xf32>
    %c1_12 = arith.constant 1 : index
    %c0_13 = arith.constant 0 : index
    %c0_14 = arith.constant 0 : index
    %16 = vector.load %arg3[%c1_12, %c0_13, %c0_14] : memref<3x128x128xf32, #tpu.memory_space<vmem>>, vector<1x128x128xf32>
    %17 = vector.shape_cast %16 : vector<1x128x128xf32> to vector<128x128xf32>
    %cst_15 = arith.constant dense<0.000000e+00> : vector<2x128xf32>
    %18 = tpu.matmul %15, %17, %cst_15 {dimension_numbers = #tpu.dot_dimension_numbers<[1], [0], [0], [1], [0, 0, 1, 1], [], []>} : vector<2x128xf32>, vector<128x128xf32>, vector<2x128xf32> -> vector<2x128xf32>
    %c2 = arith.constant 2 : index
    %c0_16 = arith.constant 0 : index
    %19 = vector.load %arg4[%c2, %c0_16] : memref<8x128xf32, #tpu.memory_space<vmem>>, vector<1x128xf32>
    %20 = vector.broadcast %19 : vector<1x128xf32> to vector<2x128xf32>
    %21 = arith.addf %18, %20 : vector<2x128xf32>
    %cst_17 = arith.constant 0.000000e+00 : f32
    %22 = vector.broadcast %cst_17 : f32 to vector<2x128xf32>
    %23 = arith.maximumf %21, %22 : vector<2x128xf32>
    %c2_18 = arith.constant 2 : index
    %c0_19 = arith.constant 0 : index
    %c0_20 = arith.constant 0 : index
    %24 = vector.load %arg3[%c2_18, %c0_19, %c0_20] : memref<3x128x128xf32, #tpu.memory_space<vmem>>, vector<1x128x128xf32>
    %25 = vector.shape_cast %24 : vector<1x128x128xf32> to vector<128x128xf32>
    %cst_21 = arith.constant dense<0.000000e+00> : vector<2x128xf32>
    %26 = tpu.matmul %23, %25, %cst_21 {dimension_numbers = #tpu.dot_dimension_numbers<[1], [0], [0], [1], [0, 0, 1, 1], [], []>} : vector<2x128xf32>, vector<128x128xf32>, vector<2x128xf32> -> vector<2x128xf32>
    %c3 = arith.constant 3 : index
    %c0_22 = arith.constant 0 : index
    %27 = vector.load %arg4[%c3, %c0_22] : memref<8x128xf32, #tpu.memory_space<vmem>>, vector<1x128xf32>
    %28 = vector.broadcast %27 : vector<1x128xf32> to vector<2x128xf32>
    %29 = arith.addf %26, %28 : vector<2x128xf32>
    %c0_23 = arith.constant 0 : index
    %c0_24 = arith.constant 0 : index
    %30 = vector.load %arg5[%c0_23, %c0_24] : memref<2x128xf32, #tpu.memory_space<vmem>>, vector<2x128xf32>
    tpu.vector_store %arg5[%c0_23, %c0_24], %29 {strides = array<i32>} : memref<2x128xf32, #tpu.memory_space<vmem>>, vector<2x128xf32>,
    return
  }
  func.func @transform_0(%arg0: i32) -> (i32, i32) {
    %c0_i32 = arith.constant 0 : i32
    %c0_i32_0 = arith.constant 0 : i32
    return %arg0, %c0_i32 : i32, i32
  }
  func.func @transform_1(%arg0: i32) -> (i32, i32) {
    %c0_i32 = arith.constant 0 : i32
    %c0_i32_0 = arith.constant 0 : i32
    %c0_i32_1 = arith.constant 0 : i32
    return %c0_i32, %c0_i32_0 : i32, i32
  }
  func.func @transform_2(%arg0: i32) -> (i32, i32, i32) {
    %c0_i32 = arith.constant 0 : i32
    %c0_i32_0 = arith.constant 0 : i32
    %c0_i32_1 = arith.constant 0 : i32
    %c0_i32_2 = arith.constant 0 : i32
    return %c0_i32, %c0_i32_0, %c0_i32_1 : i32, i32, i32
  }
  func.func @transform_3(%arg0: i32) -> (i32, i32) {
    %c0_i32 = arith.constant 0 : i32
    %c0_i32_0 = arith.constant 0 : i32
    %c0_i32_1 = arith.constant 0 : i32
    return %c0_i32, %c0_i32_0 : i32, i32
  }
  func.func @transform_4(%arg0: i32) -> (i32, i32) {
    %c0_i32 = arith.constant 0 : i32
    %c0_i32_0 = arith.constant 0 : i32
    return %arg0, %c0_i32 : i32, i32
  }
}

</mosaic_0001>

<llo_original>
// kernel: qnet_forward.1
$region0: #{qnet_forward.1}
  #allocation0 [shape = 'u32[]', space=smem, size = 0x4, offset = 0x4, fixed_abs, tag = 'smem constant byte address 0x4 - core index']
  #allocation1 [shape = 'u32[144,128]{1,0:T(1,128)}', space=vmem, size = 0x12000, scoped, tag = 'internal scratch']
  %s0 = inlined_call_operand.hbm [shape: f32[2,4], index: 0, kind: input, shape index: {}]
  %s1 = inlined_call_operand.hbm [shape: f32[4,128], index: 1, kind: input, shape index: {}]
  %s2 = inlined_call_operand.hbm [shape: f32[3,128,128], index: 2, kind: input, shape index: {}]
  %s3 = inlined_call_operand.vmem [shape: f32[8,128], index: 3, kind: input, shape index: {}]
  %s4 = inlined_call_operand.hbm [shape: f32[2,128], index: 4, kind: output, shape index: {}]
  %s5 = sld [smem:[#allocation0]]
  $region38: #{qnet_forward.1} parent=0
    _
  %s7 = ssub.s32 1, %s5
  %s8 = scalar_select 0, %s7, %s5
  $region1: #{qnet_forward.1} parent=0
    #allocation2 [shape = 'u8[1024]{0}', space=vmem, size = 0x400, scoped, tag = 'input window, operand 0, single buffered']
    #allocation3 [shape = 's32[1]{0}', space=sflag, size = 0x4, scoped, tag = 'scoped memory for qnet_forward.1']
    #allocation4 [shape = 's32[1]{0}', space=sflag, size = 0x4, scoped, tag = 'scoped memory for qnet_forward.1']
    #allocation5 [shape = 'u8[2048]{0}', space=vmem, size = 0x800, scoped, tag = 'input window, operand 1, single buffered']
    #allocation6 [shape = 's32[1]{0}', space=sflag, size = 0x4, scoped, tag = 'scoped memory for qnet_forward.1']
    #allocation7 [shape = 'u8[196608]{0}', space=vmem, size = 0x30000, scoped, tag = 'input window, operand 2, single buffered']
    #allocation8 [shape = 'u8[1024]{0}', space=vmem, size = 0x400, scoped, tag = 'output window, operand 0, single buffered']
    %9 = vsyncpa [#allocation3], 0
    %10 = vsyncpa [#allocation6], 0
    %11 = vsyncpa [#allocation4], 0
    // Predicated region
    $region2: #{qnet_forward.1} parent=1 // pred_check
      _
    $region3: #{qnet_forward.1} parent=1 // pred_check_branch
      %13 = sbr.rel (0) target = $region5
    $region4: #{qnet_forward.1} parent=1 // pred_region
      %s15 = ssub.s32 32, 32
      %16 = vsyncadd [#allocation3], %s15
      %s18 = sshll.u32 [#allocation2], 4
      %s19 = int_to_ptr.vmem [resolvable:$true] %s18
      %21 = dma.hbm_to_vmem [thread:$0]  %s0, 32, %s19, [#allocation3]
    $region5: #{qnet_forward.1} parent=1 // pred_fallthru
      _
    // Predicated region
    $region6: #{qnet_forward.1} parent=1 // pred_check
      _
    $region7: #{qnet_forward.1} parent=1 // pred_check_branch
      %23 = sbr.rel (0) target = $region9
    $region8: #{qnet_forward.1} parent=1 // pred_region
      %s25 = ssub.s32 64, 64
      %26 = vsyncadd [#allocation6], %s25
      %s28 = sshll.u32 [#allocation5], 4
      %s29 = int_to_ptr.vmem [resolvable:$true] %s28
      %31 = dma.hbm_to_vmem [thread:$0]  %s1, 64, %s29, [#allocation6]
    $region9: #{qnet_forward.1} parent=1 // pred_fallthru
      _
    // Predicated region
    $region10: #{qnet_forward.1} parent=1 // pred_check
      _
    $region11: #{qnet_forward.1} parent=1 // pred_check_branch
      %33 = sbr.rel (0) target = $region13
    $region12: #{qnet_forward.1} parent=1 // pred_region
      %s35 = ssub.s32 6144, 6144
      %36 = vsyncadd [#allocation6], %s35
      %s37 = sshll.u32 [#allocation7], 4
      %s38 = int_to_ptr.vmem [resolvable:$true] %s37
      %43 = dma.hbm_to_vmem [thread:$0]  %s2, 6144, %s38, [#allocation6], 128, 128, 8
    $region13: #{qnet_forward.1} parent=1 // pred_fallthru
      _
    // Predicated region
    $region14: #{qnet_forward.1} parent=1 // pred_check
      _
    $region15: #{qnet_forward.1} parent=1 // pred_check_branch
      %45 = sbr.rel (0) target = $region17
    $region16: #{qnet_forward.1} parent=1 // pred_region
      _
    $region17: #{qnet_forward.1} parent=1 // pred_fallthru
      _
    // Predicated region
    $region18: #{qnet_forward.1} parent=1 // pred_check
      _
    $region19: #{qnet_forward.1} parent=1 // pred_check_branch
      %47 = sbr.rel (0) target = $region21
    $region20: #{qnet_forward.1} parent=1 // pred_region
      %48 = dma.done [#allocation3], 32
    $region21: #{qnet_forward.1} parent=1 // pred_fallthru
      _
    // Predicated region
    $region22: #{qnet_forward.1} parent=1 // pred_check
      _
    $region23: #{qnet_forward.1} parent=1 // pred_check_branch
      %50 = sbr.rel (0) target = $region25
    $region24: #{qnet_forward.1} parent=1 // pred_region
      %51 = dma.done [#allocation6], 64
    $region25: #{qnet_forward.1} parent=1 // pred_fallthru
      _
    // Predicated region
    $region26: #{qnet_forward.1} parent=1 // pred_check
      _
    $region27: #{qnet_forward.1} parent=1 // pred_check_branch
      %53 = sbr.rel (0) target = $region29
    $region28: #{qnet_forward.1} parent=1 // pred_region
      %54 = dma.done [#allocation6], 6144
    $region29: #{qnet_forward.1} parent=1 // pred_fallthru
      _
    %v55 = vld [vmem:[#allocation2] sm:$0x3]
    %v56 = vld [vmem:[#allocation5] sm:$0xf]
    %v57 = vld [vmem:[%s3] sm:$0x1]
    %v58 = vlaneseq
    %v59 = vshrl.u32 %v58, 7
    %v60 = vsub.s32 0, %v59
    %v61 = vrot.slane %v57, %v60
    %vm62 = vcmask 31744
    %v64 = vsel %vm62, %v55, 0
    %vm66 = vcmask 1043456
    %v68 = vsel %vm66, %v56, 0
    %70 = vmatprep.subr.mxu0 0.0
    %71 = vmatpush1.msra.mxu0 %v68
    %72 = vmatprep.subr.mxu0 0.0
    %73 = vmatpush1.msra.mxu0 0.0
    %74 = vmatprep.subr.mxu0 0.0
    %75 = vmatpush1.msra.mxu0 0.0
    %76 = vmatprep.subr.mxu0 0.0
    %77 = vmatpush1.msra.mxu0 0.0
    %78 = vmatprep.subr.mxu0 0.0
    %79 = vmatpush1.msra.mxu0 0.0
    %80 = vmatprep.subr.mxu0 0.0
    %81 = vmatpush1.msra.mxu0 0.0
    %82 = vmatprep.subr.mxu0 0.0
    %83 = vmatpush1.msra.mxu0 0.0
    %84 = vmatprep.subr.mxu0 0.0
    %85 = vmatpush1.msra.mxu0 0.0
    %86 = vmatprep.subr.mxu0 0.0
    %87 = vmatpush1.msra.mxu0 0.0
    %88 = vmatprep.subr.mxu0 0.0
    %89 = vmatpush1.msra.mxu0 0.0
    %90 = vmatprep.subr.mxu0 0.0
    %91 = vmatpush1.msra.mxu0 0.0
    %92 = vmatprep.subr.mxu0 0.0
    %93 = vmatpush1.msra.mxu0 0.0
    %94 = vmatprep.subr.mxu0 0.0
    %95 = vmatpush1.msra.mxu0 0.0
    %96 = vmatprep.subr.mxu0 0.0
    %97 = vmatpush1.msra.mxu0 0.0
    %98 = vmatprep.subr.mxu0 0.0
    %99 = vmatpush1.msra.mxu0 0.0
    %100 = vmatprep.subr.mxu0 0.0
    %101 = vmatpush1.msra.mxu0 0.0
    %102 = vmatprep.subr.mxu0 0.0
    %103 = vmatpush1.msra.mxu0 0.0
    %104 = vmatprep.subr.mxu0 0.0
    %105 = vmatpush1.msra.mxu0 0.0
    %106 = vmatprep.subr.mxu0 0.0
    %107 = vmatpush1.msra.mxu0 0.0
    %108 = vmatprep.subr.mxu0 0.0
    %109 = vmatpush1.msra.mxu0 0.0
    %110 = vmatprep.subr.mxu0 0.0
    %111 = vmatpush1.msra.mxu0 0.0
    %112 = vmatprep.subr.mxu0 0.0
    %113 = vmatpush1.msra.mxu0 0.0
    %114 = vmatprep.subr.mxu0 0.0
    %115 = vmatpush1.msra.mxu0 0.0
    %116 = vmatprep.subr.mxu0 0.0
    %117 = vmatpush1.msra.mxu0 0.0
    %118 = vmatprep.subr.mxu0 0.0
    %119 = vmatpush1.msra.mxu0 0.0
    %120 = vmatprep.subr.mxu0 0.0
    %121 = vmatpush1.msra.mxu0 0.0
    %122 = vmatprep.subr.mxu0 0.0
    %123 = vmatpush1.msra.mxu0 0.0
    %124 = vmatprep.subr.mxu0 0.0
    %125 = vmatpush1.msra.mxu0 0.0
    %126 = vmatprep.subr.mxu0 0.0
    %127 = vmatpush1.msra.mxu0 0.0
    %128 = vmatprep.subr.mxu0 0.0
    %129 = vmatpush1.msra.mxu0 0.0
    %130 = vmatprep.subr.mxu0 0.0
    %131 = vmatpush1.msra.mxu0 0.0
    %132 = vmatprep.subr.mxu0 0.0
    %133 = vmatpush1.msra.mxu0 0.0
    %134 = vmatprep.mubr.f32.mxu0 0.0
    %135 = vmatmul.mubr.f32.gmra.mrb[0].mxu0 %v64
    %v136 = vpop.f32.mrb[0].mxu0
    %v137 = vadd.f32 %v61, %v136
    %v138 = vpop.f32.mrb[0].mxu0
    %139 = vdwg.mxu0
    %v140 = vmax.f32 %v137, 0.0
    %v141 = vld [vmem:[#allocation7] sm:$0xff]
    %v142 = vld [vmem:[#allocation7 + $0x8] sm:$0xff]
    %v143 = vld [vmem:[#allocation7 + $0x10] sm:$0xff]
    %v144 = vld [vmem:[#allocation7 + $0x18] sm:$0xff]
    %v145 = vld [vmem:[#allocation7 + $0x20] sm:$0xff]
    %v146 = vld [vmem:[#allocation7 + $0x28] sm:$0xff]
    %v147 = vld [vmem:[#allocation7 + $0x30] sm:$0xff]
    %v148 = vld [vmem:[#allocation7 + $0x38] sm:$0xff]
    %v149 = vld [vmem:[#allocation7 + $0x40] sm:$0xff]
    %v150 = vld [vmem:[#allocation7 + $0x48] sm:$0xff]
    %v151 = vld [vmem:[#allocation7 + $0x50] sm:$0xff]
    %v152 = vld [vmem:[#allocation7 + $0x58] sm:$0xff]
    %v153 = vld [vmem:[#allocation7 + $0x60] sm:$0xff]
    %v154 = vld [vmem:[#allocation7 + $0x68] sm:$0xff]
    %v155 = vld [vmem:[#allocation7 + $0x70] sm:$0xff]
    %v156 = vld [vmem:[#allocation7 + $0x78] sm:$0xff]
    %v157 = vld [vmem:[%s3 + $0x1] sm:$0x1]
    %v158 = vlaneseq
    %v159 = vshrl.u32 %v158, 7
    %v160 = vsub.s32 0, %v159
    %v161 = vrot.slane %v157, %v160
    %162 = vmatprep.subr.mxu0 0.0
    %163 = vmatpush1.msra.mxu0 %v141
    %164 = vmatprep.subr.mxu0 0.0
    %165 = vmatpush1.msra.mxu0 %v142
    %166 = vmatprep.subr.mxu0 0.0
    %167 = vmatpush1.msra.mxu0 %v143
    %168 = vmatprep.subr.mxu0 0.0
    %169 = vmatpush1.msra.mxu0 %v144
    %170 = vmatprep.subr.mxu0 0.0
    %171 = vmatpush1.msra.mxu0 %v145
    %172 = vmatprep.subr.mxu0 0.0
    %173 = vmatpush1.msra.mxu0 %v146
    %174 = vmatprep.subr.mxu0 0.0
    %175 = vmatpush1.msra.mxu0 %v147
    %176 = vmatprep.subr.mxu0 0.0
    %177 = vmatpush1.msra.mxu0 %v148
    %178 = vmatprep.subr.mxu0 0.0
    %179 = vmatpush1.msra.mxu0 %v149
    %180 = vmatprep.subr.mxu0 0.0
    %181 = vmatpush1.msra.mxu0 %v150
    %182 = vmatprep.subr.mxu0 0.0
    %183 = vmatpush1.msra.mxu0 %v151
    %184 = vmatprep.subr.mxu0 0.0
    %185 = vmatpush1.msra.mxu0 %v152
    %186 = vmatprep.subr.mxu0 0.0
    %187 = vmatpush1.msra.mxu0 %v153
    %188 = vmatprep.subr.mxu0 0.0
    %189 = vmatpush1.msra.mxu0 %v154
    %190 = vmatprep.subr.mxu0 0.0
    %191 = vmatpush1.msra.mxu0 %v155
    %192 = vmatprep.subr.mxu0 0.0
    %193 = vmatpush1.msra.mxu0 %v156
    %194 = vmatprep.subr.mxu0 0.0
    %195 = vmatpush1.msra.mxu0 0.0
    %196 = vmatprep.subr.mxu0 0.0
    %197 = vmatpush1.msra.mxu0 0.0
    %198 = vmatprep.subr.mxu0 0.0
    %199 = vmatpush1.msra.mxu0 0.0
    %200 = vmatprep.subr.mxu0 0.0
    %201 = vmatpush1.msra.mxu0 0.0
    %202 = vmatprep.subr.mxu0 0.0
    %203 = vmatpush1.msra.mxu0 0.0
    %204 = vmatprep.subr.mxu0 0.0
    %205 = vmatpush1.msra.mxu0 0.0
    %206 = vmatprep.subr.mxu0 0.0
    %207 = vmatpush1.msra.mxu0 0.0
    %208 = vmatprep.subr.mxu0 0.0
    %209 = vmatpush1.msra.mxu0 0.0
    %210 = vmatprep.subr.mxu0 0.0
    %211 = vmatpush1.msra.mxu0 0.0
    %212 = vmatprep.subr.mxu0 0.0
    %213 = vmatpush1.msra.mxu0 0.0
    %214 = vmatprep.subr.mxu0 0.0
    %215 = vmatpush1.msra.mxu0 0.0
    %216 = vmatprep.subr.mxu0 0.0
    %217 = vmatpush1.msra.mxu0 0.0
    %218 = vmatprep.subr.mxu0 0.0
    %219 = vmatpush1.msra.mxu0 0.0
    %220 = vmatprep.subr.mxu0 0.0
    %221 = vmatpush1.msra.mxu0 0.0
    %222 = vmatprep.subr.mxu0 0.0
    %223 = vmatpush1.msra.mxu0 0.0
    %224 = vmatprep.subr.mxu0 0.0
    %225 = vmatpush1.msra.mxu0 0.0
    %226 = vmatprep.mubr.f32.mxu0 0.0
    %227 = vmatmul.mubr.f32.gmra.mrb[0].mxu0 %v140
    %v228 = vpop.f32.mrb[0].mxu0
    %v229 = vadd.f32 %v161, %v228
    %v230 = vpop.f32.mrb[0].mxu0
    %231 = vdwg.mxu0
    %v232 = vmax.f32 %v229, 0.0
    %s233 = scalar_lea.vmem [#allocation7], 128
    %v234 = vld [vmem:[%s233] sm:$0xff]
    %v235 = vld [vmem:[%s233 + $0x8] sm:$0xff]
    %v236 = vld [vmem:[%s233 + $0x10] sm:$0xff]
    %v237 = vld [vmem:[%s233 + $0x18] sm:$0xff]
    %v238 = vld [vmem:[%s233 + $0x20] sm:$0xff]
    %v239 = vld [vmem:[%s233 + $0x28] sm:$0xff]
    %v240 = vld [vmem:[%s233 + $0x30] sm:$0xff]
    %v241 = vld [vmem:[%s233 + $0x38] sm:$0xff]
    %v242 = vld [vmem:[%s233 + $0x40] sm:$0xff]
    %v243 = vld [vmem:[%s233 + $0x48] sm:$0xff]
    %v244 = vld [vmem:[%s233 + $0x50] sm:$0xff]
    %v245 = vld [vmem:[%s233 + $0x58] sm:$0xff]
    %v246 = vld [vmem:[%s233 + $0x60] sm:$0xff]
    %v247 = vld [vmem:[%s233 + $0x68] sm:$0xff]
    %v248 = vld [vmem:[%s233 + $0x70] sm:$0xff]
    %v249 = vld [vmem:[%s233 + $0x78] sm:$0xff]
    %v250 = vld [vmem:[%s3 + $0x2] sm:$0x1]
    %v251 = vlaneseq
    %v252 = vshrl.u32 %v251, 7
    %v253 = vsub.s32 0, %v252
    %v254 = vrot.slane %v250, %v253
    %255 = vmatprep.subr.mxu0 0.0
    %256 = vmatpush1.msra.mxu0 %v234
    %257 = vmatprep.subr.mxu0 0.0
    %258 = vmatpush1.msra.mxu0 %v235
    %259 = vmatprep.subr.mxu0 0.0
    %260 = vmatpush1.msra.mxu0 %v236
    %261 = vmatprep.subr.mxu0 0.0
    %262 = vmatpush1.msra.mxu0 %v237
    %263 = vmatprep.subr.mxu0 0.0
    %264 = vmatpush1.msra.mxu0 %v238
    %265 = vmatprep.subr.mxu0 0.0
    %266 = vmatpush1.msra.mxu0 %v239
    %267 = vmatprep.subr.mxu0 0.0
    %268 = vmatpush1.msra.mxu0 %v240
    %269 = vmatprep.subr.mxu0 0.0
    %270 = vmatpush1.msra.mxu0 %v241
    %271 = vmatprep.subr.mxu0 0.0
    %272 = vmatpush1.msra.mxu0 %v242
    %273 = vmatprep.subr.mxu0 0.0
    %274 = vmatpush1.msra.mxu0 %v243
    %275 = vmatprep.subr.mxu0 0.0
    %276 = vmatpush1.msra.mxu0 %v244
    %277 = vmatprep.subr.mxu0 0.0
    %278 = vmatpush1.msra.mxu0 %v245
    %279 = vmatprep.subr.mxu0 0.0
    %280 = vmatpush1.msra.mxu0 %v246
    %281 = vmatprep.subr.mxu0 0.0
    %282 = vmatpush1.msra.mxu0 %v247
    %283 = vmatprep.subr.mxu0 0.0
    %284 = vmatpush1.msra.mxu0 %v248
    %285 = vmatprep.subr.mxu0 0.0
    %286 = vmatpush1.msra.mxu0 %v249
    %287 = vmatprep.subr.mxu0 0.0
    %288 = vmatpush1.msra.mxu0 0.0
    %289 = vmatprep.subr.mxu0 0.0
    %290 = vmatpush1.msra.mxu0 0.0
    %291 = vmatprep.subr.mxu0 0.0
    %292 = vmatpush1.msra.mxu0 0.0
    %293 = vmatprep.subr.mxu0 0.0
    %294 = vmatpush1.msra.mxu0 0.0
    %295 = vmatprep.subr.mxu0 0.0
    %296 = vmatpush1.msra.mxu0 0.0
    %297 = vmatprep.subr.mxu0 0.0
    %298 = vmatpush1.msra.mxu0 0.0
    %299 = vmatprep.subr.mxu0 0.0
    %300 = vmatpush1.msra.mxu0 0.0
    %301 = vmatprep.subr.mxu0 0.0
    %302 = vmatpush1.msra.mxu0 0.0
    %303 = vmatprep.subr.mxu0 0.0
    %304 = vmatpush1.msra.mxu0 0.0
    %305 = vmatprep.subr.mxu0 0.0
    %306 = vmatpush1.msra.mxu0 0.0
    %307 = vmatprep.subr.mxu0 0.0
    %308 = vmatpush1.msra.mxu0 0.0
    %309 = vmatprep.subr.mxu0 0.0
    %310 = vmatpush1.msra.mxu0 0.0
    %311 = vmatprep.subr.mxu0 0.0
    %312 = vmatpush1.msra.mxu0 0.0
    %313 = vmatprep.subr.mxu0 0.0
    %314 = vmatpush1.msra.mxu0 0.0
    %315 = vmatprep.subr.mxu0 0.0
    %316 = vmatpush1.msra.mxu0 0.0
    %317 = vmatprep.subr.mxu0 0.0
    %318 = vmatpush1.msra.mxu0 0.0
    %319 = vmatprep.mubr.f32.mxu0 0.0
    %320 = vmatmul.mubr.f32.gmra.mrb[0].mxu0 %v232
    %v321 = vpop.f32.mrb[0].mxu0
    %v322 = vadd.f32 %v254, %v321
    %v323 = vpop.f32.mrb[0].mxu0
    %324 = vdwg.mxu0
    %v325 = vmax.f32 %v322, 0.0
    %s326 = scalar_lea.vmem [#allocation7], 256
    %v327 = vld [vmem:[%s326] sm:$0xff]
    %v328 = vld [vmem:[%s326 + $0x8] sm:$0xff]
    %v329 = vld [vmem:[%s326 + $0x10] sm:$0xff]
    %v330 = vld [vmem:[%s326 + $0x18] sm:$0xff]
    %v331 = vld [vmem:[%s326 + $0x20] sm:$0xff]
    %v332 = vld [vmem:[%s326 + $0x28] sm:$0xff]
    %v333 = vld [vmem:[%s326 + $0x30] sm:$0xff]
    %v334 = vld [vmem:[%s326 + $0x38] sm:$0xff]
    %v335 = vld [vmem:[%s326 + $0x40] sm:$0xff]
    %v336 = vld [vmem:[%s326 + $0x48] sm:$0xff]
    %v337 = vld [vmem:[%s326 + $0x50] sm:$0xff]
    %v338 = vld [vmem:[%s326 + $0x58] sm:$0xff]
    %v339 = vld [vmem:[%s326 + $0x60] sm:$0xff]
    %v340 = vld [vmem:[%s326 + $0x68] sm:$0xff]
    %v341 = vld [vmem:[%s326 + $0x70] sm:$0xff]
    %v342 = vld [vmem:[%s326 + $0x78] sm:$0xff]
    %v343 = vld [vmem:[%s3 + $0x3] sm:$0x1]
    %v344 = vlaneseq
    %v345 = vshrl.u32 %v344, 7
    %v346 = vsub.s32 0, %v345
    %v347 = vrot.slane %v343, %v346
    %348 = vmatprep.subr.mxu0 0.0
    %349 = vmatpush1.msra.mxu0 %v327
    %350 = vmatprep.subr.mxu0 0.0
    %351 = vmatpush1.msra.mxu0 %v328
    %352 = vmatprep.subr.mxu0 0.0
    %353 = vmatpush1.msra.mxu0 %v329
    %354 = vmatprep.subr.mxu0 0.0
    %355 = vmatpush1.msra.mxu0 %v330
    %356 = vmatprep.subr.mxu0 0.0
    %357 = vmatpush1.msra.mxu0 %v331
    %358 = vmatprep.subr.mxu0 0.0
    %359 = vmatpush1.msra.mxu0 %v332
    %360 = vmatprep.subr.mxu0 0.0
    %361 = vmatpush1.msra.mxu0 %v333
    %362 = vmatprep.subr.mxu0 0.0
    %363 = vmatpush1.msra.mxu0 %v334
    %364 = vmatprep.subr.mxu0 0.0
    %365 = vmatpush1.msra.mxu0 %v335
    %366 = vmatprep.subr.mxu0 0.0
    %367 = vmatpush1.msra.mxu0 %v336
    %368 = vmatprep.subr.mxu0 0.0
    %369 = vmatpush1.msra.mxu0 %v337
    %370 = vmatprep.subr.mxu0 0.0
    %371 = vmatpush1.msra.mxu0 %v338
    %372 = vmatprep.subr.mxu0 0.0
    %373 = vmatpush1.msra.mxu0 %v339
    %374 = vmatprep.subr.mxu0 0.0
    %375 = vmatpush1.msra.mxu0 %v340
    %376 = vmatprep.subr.mxu0 0.0
    %377 = vmatpush1.msra.mxu0 %v341
    %378 = vmatprep.subr.mxu0 0.0
    %379 = vmatpush1.msra.mxu0 %v342
    %380 = vmatprep.subr.mxu0 0.0
    %381 = vmatpush1.msra.mxu0 0.0
    %382 = vmatprep.subr.mxu0 0.0
    %383 = vmatpush1.msra.mxu0 0.0
    %384 = vmatprep.subr.mxu0 0.0
    %385 = vmatpush1.msra.mxu0 0.0
    %386 = vmatprep.subr.mxu0 0.0
    %387 = vmatpush1.msra.mxu0 0.0
    %388 = vmatprep.subr.mxu0 0.0
    %389 = vmatpush1.msra.mxu0 0.0
    %390 = vmatprep.subr.mxu0 0.0
    %391 = vmatpush1.msra.mxu0 0.0
    %392 = vmatprep.subr.mxu0 0.0
    %393 = vmatpush1.msra.mxu0 0.0
    %394 = vmatprep.subr.mxu0 0.0
    %395 = vmatpush1.msra.mxu0 0.0
    %396 = vmatprep.subr.mxu0 0.0
    %397 = vmatpush1.msra.mxu0 0.0
    %398 = vmatprep.subr.mxu0 0.0
    %399 = vmatpush1.msra.mxu0 0.0
    %400 = vmatprep.subr.mxu0 0.0
    %401 = vmatpush1.msra.mxu0 0.0
    %402 = vmatprep.subr.mxu0 0.0
    %403 = vmatpush1.msra.mxu0 0.0
    %404 = vmatprep.subr.mxu0 0.0
    %405 = vmatpush1.msra.mxu0 0.0
    %406 = vmatprep.subr.mxu0 0.0
    %407 = vmatpush1.msra.mxu0 0.0
    %408 = vmatprep.subr.mxu0 0.0
    %409 = vmatpush1.msra.mxu0 0.0
    %410 = vmatprep.subr.mxu0 0.0
    %411 = vmatpush1.msra.mxu0 0.0
    %412 = vmatprep.mubr.f32.mxu0 0.0
    %413 = vmatmul.mubr.f32.gmra.mrb[0].mxu0 %v325
    %v414 = vpop.f32.mrb[0].mxu0
    %v415 = vadd.f32 %v347, %v414
    %v416 = vpop.f32.mrb[0].mxu0
    %417 = vdwg.mxu0
    %418 = vst [vmem:[#allocation8] sm:$0x3] %v415
    // Predicated region
    $region30: #{qnet_forward.1} parent=1 // pred_check
      _
    $region31: #{qnet_forward.1} parent=1 // pred_check_branch
      %420 = sbr.rel (0) target = $region33
    $region32: #{qnet_forward.1} parent=1 // pred_region
      %s422 = ssub.s32 32, 32
      %423 = vsyncadd [#allocation4], %s422
      %s425 = sshll.u32 [#allocation8], 4
      %s426 = int_to_ptr.vmem [resolvable:$true] %s425
      %428 = dma.vmem_to_hbm [thread:$0]  %s426, 32, %s4, [#allocation4]
    $region33: #{qnet_forward.1} parent=1 // pred_fallthru
      _
    // Predicated region
    $region34: #{qnet_forward.1} parent=1 // pred_check
      _
    $region35: #{qnet_forward.1} parent=1 // pred_check_branch
      %430 = sbr.rel (0) target = $region37
    $region36: #{qnet_forward.1} parent=1 // pred_region
      %431 = dma.done [#allocation4], 32
    $region37: #{qnet_forward.1} parent=1 // pred_fallthru
      _
    %432 = vsyncpa [#allocation3], 1
    %433 = vsyncpa [#allocation6], 1
    %434 = vsyncpa [#allocation4], 1

// kernel: qnet_forward.1
$region0: #{qnet_forward.1}
  #allocation0 [shape = 'u32[]', space=smem, size = 0x4, offset = 0x4, fixed_abs, tag = 'smem constant byte address 0x4 - core index']
  #allocation1 [shape = 'u32[144,128]{1,0:T(1,128)}', space=vmem, size = 0x12000, scoped, tag = 'internal scratch']
  %s0 = inlined_call_operand.hbm [shape: f32[2,4], index: 0, kind: input, shape index: {}]
  %s1 = inlined_call_operand.hbm [shape: f32[4,128], index: 1, kind: input, shape index: {}]
  %s2 = inlined_call_operand.hbm [shape: f32[3,128,128], index: 2, kind: input, shape index: {}]
  %s3 = inlined_call_operand.vmem [shape: f32[8,128], index: 3, kind: input, shape index: {}]
  %s4 = inlined_call_operand.hbm [shape: f32[2,128], index: 4, kind: output, shape index: {}]
  %s5 = sld [smem:[#allocation0]]
  $region38: #{qnet_forward.1} parent=0
    _
  %s7 = ssub.s32 1, %s5
  %s8 = scalar_select 0, %s7, %s5
  $region1: #{qnet_forward.1} parent=0
    #allocation2 [shape = 'u8[1024]{0}', space=vmem, size = 0x400, scoped, tag = 'input window, operand 0, single buffered']
    #allocation3 [shape = 's32[1]{0}', space=sflag, size = 0x4, scoped, tag = 'scoped memory for qnet_forward.1']
    #allocation4 [shape = 's32[1]{0}', space=sflag, size = 0x4, scoped, tag = 'scoped memory for qnet_forward.1']
    #allocation5 [shape = 'u8[2048]{0}', space=vmem, size = 0x800, scoped, tag = 'input window, operand 1, single buffered']
    #allocation6 [shape = 's32[1]{0}', space=sflag, size = 0x4, scoped, tag = 'scoped memory for qnet_forward.1']
    #allocation7 [shape = 'u8[196608]{0}', space=vmem, size = 0x30000, scoped, tag = 'input window, operand 2, single buffered']
    #allocation8 [shape = 'u8[1024]{0}', space=vmem, size = 0x400, scoped, tag = 'output window, operand 0, single buffered']
    %9 = vsyncpa [#allocation3], 0
    %10 = vsyncpa [#allocation6], 0
    %11 = vsyncpa [#allocation4], 0
    // Predicated region
    $region2: #{qnet_forward.1} parent=1 // pred_check
      _
    $region3: #{qnet_forward.1} parent=1 // pred_check_branch
      %13 = sbr.rel (0) target = $region5
    $region4: #{qnet_forward.1} parent=1 // pred_region
      %s15 = ssub.s32 32, 32
      %16 = vsyncadd [#allocation3], %s15
      %s18 = sshll.u32 [#allocation2], 4
      %s19 = int_to_ptr.vmem [resolvable:$true] %s18
      %21 = dma.hbm_to_vmem [thread:$0]  %s0, 32, %s19, [#allocation3]
    $region5: #{qnet_forward.1} parent=1 // pred_fallthru
      _
    // Predicated region
    $region6: #{qnet_forward.1} parent=1 // pred_check
      _
    $region7: #{qnet_forward.1} parent=1 // pred_check_branch
      %23 = sbr.rel (0) target = $region9
    $region8: #{qnet_forward.1} parent=1 // pred_region
      %s25 = ssub.s32 64, 64
      %26 = vsyncadd [#allocation6], %s25
      %s28 = sshll.u32 [#allocation5], 4
      %s29 = int_to_ptr.vmem [resolvable:$true] %s28
      %31 = dma.hbm_to_vmem [thread:$0]  %s1, 64, %s29, [#allocation6]
    $region9: #{qnet_forward.1} parent=1 // pred_fallthru
      _
    // Predicated region
    $region10: #{qnet_forward.1} parent=1 // pred_check
      _
    $region11: #{qnet_forward.1} parent=1 // pred_check_branch
      %33 = sbr.rel (0) target = $region13
    $region12: #{qnet_forward.1} parent=1 // pred_region
      %s35 = ssub.s32 6144, 6144
      %36 = vsyncadd [#allocation6], %s35
      %s37 = sshll.u32 [#allocation7], 4
      %s38 = int_to_ptr.vmem [resolvable:$true] %s37
      %43 = dma.hbm_to_vmem [thread:$0]  %s2, 6144, %s38, [#allocation6], 128, 128, 8
    $region13: #{qnet_forward.1} parent=1 // pred_fallthru
      _
    // Predicated region
    $region14: #{qnet_forward.1} parent=1 // pred_check
      _
    $region15: #{qnet_forward.1} parent=1 // pred_check_branch
      %45 = sbr.rel (0) target = $region17
    $region16: #{qnet_forward.1} parent=1 // pred_region
      _
    $region17: #{qnet_forward.1} parent=1 // pred_fallthru
      _
    // Predicated region
    $region18: #{qnet_forward.1} parent=1 // pred_check
      _
    $region19: #{qnet_forward.1} parent=1 // pred_check_branch
      %47 = sbr.rel (0) target = $region21
    $region20: #{qnet_forward.1} parent=1 // pred_region
      %48 = dma.done [#allocation3], 32
    $region21: #{qnet_forward.1} parent=1 // pred_fallthru
      _
    // Predicated region
    $region22: #{qnet_forward.1} parent=1 // pred_check
      _
    $region23: #{qnet_forward.1} parent=1 // pred_check_branch
      %50 = sbr.rel (0) target = $region25
    $region24: #{qnet_forward.1} parent=1 // pred_region
      %51 = dma.done [#allocation6], 64
    $region25: #{qnet_forward.1} parent=1 // pred_fallthru
      _
    // Predicated region
    $region26: #{qnet_forward.1} parent=1 // pred_check
      _
    $region27: #{qnet_forward.1} parent=1 // pred_check_branch
      %53 = sbr.rel (0) target = $region29
    $region28: #{qnet_forward.1} parent=1 // pred_region
      %54 = dma.done [#allocation6], 6144
    $region29: #{qnet_forward.1} parent=1 // pred_fallthru
      _
    %v55 = vld [vmem:[#allocation2] sm:$0x3]
    %v56 = vld [vmem:[#allocation5] sm:$0xf]
    %v57 = vld [vmem:[%s3] sm:$0x1]
    %v58 = vlaneseq
    %v59 = vshrl.u32 %v58, 7
    %v60 = vsub.s32 0, %v59
    %v61 = vrot.slane %v57, %v60
    %vm62 = vcmask 31744
    %v64 = vsel %vm62, %v55, 0
    %vm66 = vcmask 1043456
    %v68 = vsel %vm66, %v56, 0
    %70 = vmatprep.subr.mxu0 0.0
    %71 = vmatpush1.msra.mxu0 %v68
    %72 = vmatprep.subr.mxu0 0.0
    %73 = vmatpush1.msra.mxu0 0.0
    %74 = vmatprep.subr.mxu0 0.0
    %75 = vmatpush1.msra.mxu0 0.0
    %76 = vmatprep.subr.mxu0 0.0
    %77 = vmatpush1.msra.mxu0 0.0
    %78 = vmatprep.subr.mxu0 0.0
    %79 = vmatpush1.msra.mxu0 0.0
    %80 = vmatprep.subr.mxu0 0.0
    %81 = vmatpush1.msra.mxu0 0.0
    %82 = vmatprep.subr.mxu0 0.0
    %83 = vmatpush1.msra.mxu0 0.0
    %84 = vmatprep.subr.mxu0 0.0
    %85 = vmatpush1.msra.mxu0 0.0
    %86 = vmatprep.subr.mxu0 0.0
    %87 = vmatpush1.msra.mxu0 0.0
    %88 = vmatprep.subr.mxu0 0.0
    %89 = vmatpush1.msra.mxu0 0.0
    %90 = vmatprep.subr.mxu0 0.0
    %91 = vmatpush1.msra.mxu0 0.0
    %92 = vmatprep.subr.mxu0 0.0
    %93 = vmatpush1.msra.mxu0 0.0
    %94 = vmatprep.subr.mxu0 0.0
    %95 = vmatpush1.msra.mxu0 0.0
    %96 = vmatprep.subr.mxu0 0.0
    %97 = vmatpush1.msra.mxu0 0.0
    %98 = vmatprep.subr.mxu0 0.0
    %99 = vmatpush1.msra.mxu0 0.0
    %100 = vmatprep.subr.mxu0 0.0
    %101 = vmatpush1.msra.mxu0 0.0
    %102 = vmatprep.subr.mxu0 0.0
    %103 = vmatpush1.msra.mxu0 0.0
    %104 = vmatprep.subr.mxu0 0.0
    %105 = vmatpush1.msra.mxu0 0.0
    %106 = vmatprep.subr.mxu0 0.0
    %107 = vmatpush1.msra.mxu0 0.0
    %108 = vmatprep.subr.mxu0 0.0
    %109 = vmatpush1.msra.mxu0 0.0
    %110 = vmatprep.subr.mxu0 0.0
    %111 = vmatpush1.msra.mxu0 0.0
    %112 = vmatprep.subr.mxu0 0.0
    %113 = vmatpush1.msra.mxu0 0.0
    %114 = vmatprep.subr.mxu0 0.0
    %115 = vmatpush1.msra.mxu0 0.0
    %116 = vmatprep.subr.mxu0 0.0
    %117 = vmatpush1.msra.mxu0 0.0
    %118 = vmatprep.subr.mxu0 0.0
    %119 = vmatpush1.msra.mxu0 0.0
    %120 = vmatprep.subr.mxu0 0.0
    %121 = vmatpush1.msra.mxu0 0.0
    %122 = vmatprep.subr.mxu0 0.0
    %123 = vmatpush1.msra.mxu0 0.0
    %124 = vmatprep.subr.mxu0 0.0
    %125 = vmatpush1.msra.mxu0 0.0
    %126 = vmatprep.subr.mxu0 0.0
    %127 = vmatpush1.msra.mxu0 0.0
    %128 = vmatprep.subr.mxu0 0.0
    %129 = vmatpush1.msra.mxu0 0.0
    %130 = vmatprep.subr.mxu0 0.0
    %131 = vmatpush1.msra.mxu0 0.0
    %132 = vmatprep.subr.mxu0 0.0
    %133 = vmatpush1.msra.mxu0 0.0
    %134 = vmatprep.mubr.f32.mxu0 0.0
    %135 = vmatmul.mubr.f32.gmra.mrb[0].mxu0 %v64
    %v136 = vpop.f32.mrb[0].mxu0
    %v137 = vadd.f32 %v61, %v136
    %v138 = vpop.f32.mrb[0].mxu0
    %139 = vdwg.mxu0
    %v140 = vmax.f32 %v137, 0.0
    %v141 = vld [vmem:[#allocation7] sm:$0xff]
    %v142 = vld [vmem:[#allocation7 + $0x8] sm:$0xff]
    %v143 = vld [vmem:[#allocation7 + $0x10] sm:$0xff]
    %v144 = vld [vmem:[#allocation7 + $0x18] sm:$0xff]
    %v145 = vld [vmem:[#allocation7 + $0x20] sm:$0xff]
    %v146 = vld [vmem:[#allocation7 + $0x28] sm:$0xff]
    %v147 = vld [vmem:[#allocation7 + $0x30] sm:$0xff]
    %v148 = vld [vmem:[#allocation7 + $0x38] sm:$0xff]
    %v149 = vld [vmem:[#allocation7 + $0x40] sm:$0xff]
    %v150 = vld [vmem:[#allocation7 + $0x48] sm:$0xff]
    %v151 = vld [vmem:[#allocation7 + $0x50] sm:$0xff]
    %v152 = vld [vmem:[#allocation7 + $0x58] sm:$0xff]
    %v153 = vld [vmem:[#allocation7 + $0x60] sm:$0xff]
    %v154 = vld [vmem:[#allocation7 + $0x68] sm:$0xff]
    %v155 = vld [vmem:[#allocation7 + $0x70] sm:$0xff]
    %v156 = vld [vmem:[#allocation7 + $0x78] sm:$0xff]
    %v157 = vld [vmem:[%s3 + $0x1] sm:$0x1]
    %v158 = vlaneseq
    %v159 = vshrl.u32 %v158, 7
    %v160 = vsub.s32 0, %v159
    %v161 = vrot.slane %v157, %v160
    %162 = vmatprep.subr.mxu0 0.0
    %163 = vmatpush1.msra.mxu0 %v141
    %164 = vmatprep.subr.mxu0 0.0
    %165 = vmatpush1.msra.mxu0 %v142
    %166 = vmatprep.subr.mxu0 0.0
    %167 = vmatpush1.msra.mxu0 %v143
    %168 = vmatprep.subr.mxu0 0.0
    %169 = vmatpush1.msra.mxu0 %v144
    %170 = vmatprep.subr.mxu0 0.0
    %171 = vmatpush1.msra.mxu0 %v145
    %172 = vmatprep.subr.mxu0 0.0
    %173 = vmatpush1.msra.mxu0 %v146
    %174 = vmatprep.subr.mxu0 0.0
    %175 = vmatpush1.msra.mxu0 %v147
    %176 = vmatprep.subr.mxu0 0.0
    %177 = vmatpush1.msra.mxu0 %v148
    %178 = vmatprep.subr.mxu0 0.0
    %179 = vmatpush1.msra.mxu0 %v149
    %180 = vmatprep.subr.mxu0 0.0
    %181 = vmatpush1.msra.mxu0 %v150
    %182 = vmatprep.subr.mxu0 0.0
    %183 = vmatpush1.msra.mxu0 %v151
    %184 = vmatprep.subr.mxu0 0.0
    %185 = vmatpush1.msra.mxu0 %v152
    %186 = vmatprep.subr.mxu0 0.0
    %187 = vmatpush1.msra.mxu0 %v153
    %188 = vmatprep.subr.mxu0 0.0
    %189 = vmatpush1.msra.mxu0 %v154
    %190 = vmatprep.subr.mxu0 0.0
    %191 = vmatpush1.msra.mxu0 %v155
    %192 = vmatprep.subr.mxu0 0.0
    %193 = vmatpush1.msra.mxu0 %v156
    %194 = vmatprep.subr.mxu0 0.0
    %195 = vmatpush1.msra.mxu0 0.0
    %196 = vmatprep.subr.mxu0 0.0
    %197 = vmatpush1.msra.mxu0 0.0
    %198 = vmatprep.subr.mxu0 0.0
    %199 = vmatpush1.msra.mxu0 0.0
    %200 = vmatprep.subr.mxu0 0.0
    %201 = vmatpush1.msra.mxu0 0.0
    %202 = vmatprep.subr.mxu0 0.0
    %203 = vmatpush1.msra.mxu0 0.0
    %204 = vmatprep.subr.mxu0 0.0
    %205 = vmatpush1.msra.mxu0 0.0
    %206 = vmatprep.subr.mxu0 0.0
    %207 = vmatpush1.msra.mxu0 0.0
    %208 = vmatprep.subr.mxu0 0.0
    %209 = vmatpush1.msra.mxu0 0.0
    %210 = vmatprep.subr.mxu0 0.0
    %211 = vmatpush1.msra.mxu0 0.0
    %212 = vmatprep.subr.mxu0 0.0
    %213 = vmatpush1.msra.mxu0 0.0
    %214 = vmatprep.subr.mxu0 0.0
    %215 = vmatpush1.msra.mxu0 0.0
    %216 = vmatprep.subr.mxu0 0.0
    %217 = vmatpush1.msra.mxu0 0.0
    %218 = vmatprep.subr.mxu0 0.0
    %219 = vmatpush1.msra.mxu0 0.0
    %220 = vmatprep.subr.mxu0 0.0
    %221 = vmatpush1.msra.mxu0 0.0
    %222 = vmatprep.subr.mxu0 0.0
    %223 = vmatpush1.msra.mxu0 0.0
    %224 = vmatprep.subr.mxu0 0.0
    %225 = vmatpush1.msra.mxu0 0.0
    %226 = vmatprep.mubr.f32.mxu0 0.0
    %227 = vmatmul.mubr.f32.gmra.mrb[0].mxu0 %v140
    %v228 = vpop.f32.mrb[0].mxu0
    %v229 = vadd.f32 %v161, %v228
    %v230 = vpop.f32.mrb[0].mxu0
    %231 = vdwg.mxu0
    %v232 = vmax.f32 %v229, 0.0
    %s233 = scalar_lea.vmem [#allocation7], 128
    %v234 = vld [vmem:[%s233] sm:$0xff]
    %v235 = vld [vmem:[%s233 + $0x8] sm:$0xff]
    %v236 = vld [vmem:[%s233 + $0x10] sm:$0xff]
    %v237 = vld [vmem:[%s233 + $0x18] sm:$0xff]
    %v238 = vld [vmem:[%s233 + $0x20] sm:$0xff]
    %v239 = vld [vmem:[%s233 + $0x28] sm:$0xff]
    %v240 = vld [vmem:[%s233 + $0x30] sm:$0xff]
    %v241 = vld [vmem:[%s233 + $0x38] sm:$0xff]
    %v242 = vld [vmem:[%s233 + $0x40] sm:$0xff]
    %v243 = vld [vmem:[%s233 + $0x48] sm:$0xff]
    %v244 = vld [vmem:[%s233 + $0x50] sm:$0xff]
    %v245 = vld [vmem:[%s233 + $0x58] sm:$0xff]
    %v246 = vld [vmem:[%s233 + $0x60] sm:$0xff]
    %v247 = vld [vmem:[%s233 + $0x68] sm:$0xff]
    %v248 = vld [vmem:[%s233 + $0x70] sm:$0xff]
    %v249 = vld [vmem:[%s233 + $0x78] sm:$0xff]
    %v250 = vld [vmem:[%s3 + $0x2] sm:$0x1]
    %v251 = vlaneseq
    %v252 = vshrl.u32 %v251, 7
    %v253 = vsub.s32 0, %v252
    %v254 = vrot.slane %v250, %v253
    %255 = vmatprep.subr.mxu0 0.0
    %256 = vmatpush1.msra.mxu0 %v234
    %257 = vmatprep.subr.mxu0 0.0
    %258 = vmatpush1.msra.mxu0 %v235
    %259 = vmatprep.subr.mxu0 0.0
    %260 = vmatpush1.msra.mxu0 %v236
    %261 = vmatprep.subr.mxu0 0.0
    %262 = vmatpush1.msra.mxu0 %v237
    %263 = vmatprep.subr.mxu0 0.0
    %264 = vmatpush1.msra.mxu0 %v238
    %265 = vmatprep.subr.mxu0 0.0
    %266 = vmatpush1.msra.mxu0 %v239
    %267 = vmatprep.subr.mxu0 0.0
    %268 = vmatpush1.msra.mxu0 %v240
    %269 = vmatprep.subr.mxu0 0.0
    %270 = vmatpush1.msra.mxu0 %v241
    %271 = vmatprep.subr.mxu0 0.0
    %272 = vmatpush1.msra.mxu0 %v242
    %273 = vmatprep.subr.mxu0 0.0
    %274 = vmatpush1.msra.mxu0 %v243
    %275 = vmatprep.subr.mxu0 0.0
    %276 = vmatpush1.msra.mxu0 %v244
    %277 = vmatprep.subr.mxu0 0.0
    %278 = vmatpush1.msra.mxu0 %v245
    %279 = vmatprep.subr.mxu0 0.0
    %280 = vmatpush1.msra.mxu0 %v246
    %281 = vmatprep.subr.mxu0 0.0
    %282 = vmatpush1.msra.mxu0 %v247
    %283 = vmatprep.subr.mxu0 0.0
    %284 = vmatpush1.msra.mxu0 %v248
    %285 = vmatprep.subr.mxu0 0.0
    %286 = vmatpush1.msra.mxu0 %v249
    %287 = vmatprep.subr.mxu0 0.0
    %288 = vmatpush1.msra.mxu0 0.0
    %289 = vmatprep.subr.mxu0 0.0
    %290 = vmatpush1.msra.mxu0 0.0
    %291 = vmatprep.subr.mxu0 0.0
    %292 = vmatpush1.msra.mxu0 0.0
    %293 = vmatprep.subr.mxu0 0.0
    %294 = vmatpush1.msra.mxu0 0.0
    %295 = vmatprep.subr.mxu0 0.0
    %296 = vmatpush1.msra.mxu0 0.0
    %297 = vmatprep.subr.mxu0 0.0
    %298 = vmatpush1.msra.mxu0 0.0
    %299 = vmatprep.subr.mxu0 0.0
    %300 = vmatpush1.msra.mxu0 0.0
    %301 = vmatprep.subr.mxu0 0.0
    %302 = vmatpush1.msra.mxu0 0.0
    %303 = vmatprep.subr.mxu0 0.0
    %304 = vmatpush1.msra.mxu0 0.0
    %305 = vmatprep.subr.mxu0 0.0
    %306 = vmatpush1.msra.mxu0 0.0
    %307 = vmatprep.subr.mxu0 0.0
    %308 = vmatpush1.msra.mxu0 0.0
    %309 = vmatprep.subr.mxu0 0.0
    %310 = vmatpush1.msra.mxu0 0.0
    %311 = vmatprep.subr.mxu0 0.0
    %312 = vmatpush1.msra.mxu0 0.0
    %313 = vmatprep.subr.mxu0 0.0
    %314 = vmatpush1.msra.mxu0 0.0
    %315 = vmatprep.subr.mxu0 0.0
    %316 = vmatpush1.msra.mxu0 0.0
    %317 = vmatprep.subr.mxu0 0.0
    %318 = vmatpush1.msra.mxu0 0.0
    %319 = vmatprep.mubr.f32.mxu0 0.0
    %320 = vmatmul.mubr.f32.gmra.mrb[0].mxu0 %v232
    %v321 = vpop.f32.mrb[0].mxu0
    %v322 = vadd.f32 %v254, %v321
    %v323 = vpop.f32.mrb[0].mxu0
    %324 = vdwg.mxu0
    %v325 = vmax.f32 %v322, 0.0
    %s326 = scalar_lea.vmem [#allocation7], 256
    %v327 = vld [vmem:[%s326] sm:$0xff]
    %v328 = vld [vmem:[%s326 + $0x8] sm:$0xff]
    %v329 = vld [vmem:[%s326 + $0x10] sm:$0xff]
    %v330 = vld [vmem:[%s326 + $0x18] sm:$0xff]
    %v331 = vld [vmem:[%s326 + $0x20] sm:$0xff]
    %v332 = vld [vmem:[%s326 + $0x28] sm:$0xff]
    %v333 = vld [vmem:[%s326 + $0x30] sm:$0xff]
    %v334 = vld [vmem:[%s326 + $0x38] sm:$0xff]
    %v335 = vld [vmem:[%s326 + $0x40] sm:$0xff]
    %v336 = vld [vmem:[%s326 + $0x48] sm:$0xff]
    %v337 = vld [vmem:[%s326 + $0x50] sm:$0xff]
    %v338 = vld [vmem:[%s326 + $0x58] sm:$0xff]
    %v339 = vld [vmem:[%s326 + $0x60] sm:$0xff]
    %v340 = vld [vmem:[%s326 + $0x68] sm:$0xff]
    %v341 = vld [vmem:[%s326 + $0x70] sm:$0xff]
    %v342 = vld [vmem:[%s326 + $0x78] sm:$0xff]
    %v343 = vld [vmem:[%s3 + $0x3] sm:$0x1]
    %v344 = vlaneseq
    %v345 = vshrl.u32 %v344, 7
    %v346 = vsub.s32 0, %v345
    %v347 = vrot.slane %v343, %v346
    %348 = vmatprep.subr.mxu0 0.0
    %349 = vmatpush1.msra.mxu0 %v327
    %350 = vmatprep.subr.mxu0 0.0
    %351 = vmatpush1.msra.mxu0 %v328
    %352 = vmatprep.subr.mxu0 0.0
    %353 = vmatpush1.msra.mxu0 %v329
    %354 = vmatprep.subr.mxu0 0.0
    %355 = vmatpush1.msra.mxu0 %v330
    %356 = vmatprep.subr.mxu0 0.0
    %357 = vmatpush1.msra.mxu0 %v331
    %358 = vmatprep.subr.mxu0 0.0
    %359 = vmatpush1.msra.mxu0 %v332
    %360 = vmatprep.subr.mxu0 0.0
    %361 = vmatpush1.msra.mxu0 %v333
    %362 = vmatprep.subr.mxu0 0.0
    %363 = vmatpush1.msra.mxu0 %v334
    %364 = vmatprep.subr.mxu0 0.0
    %365 = vmatpush1.msra.mxu0 %v335
    %366 = vmatprep.subr.mxu0 0.0
    %367 = vmatpush1.msra.mxu0 %v336
    %368 = vmatprep.subr.mxu0 0.0
    %369 = vmatpush1.msra.mxu0 %v337
    %370 = vmatprep.subr.mxu0 0.0
    %371 = vmatpush1.msra.mxu0 %v338
    %372 = vmatprep.subr.mxu0 0.0
    %373 = vmatpush1.msra.mxu0 %v339
    %374 = vmatprep.subr.mxu0 0.0
    %375 = vmatpush1.msra.mxu0 %v340
    %376 = vmatprep.subr.mxu0 0.0
    %377 = vmatpush1.msra.mxu0 %v341
    %378 = vmatprep.subr.mxu0 0.0
    %379 = vmatpush1.msra.mxu0 %v342
    %380 = vmatprep.subr.mxu0 0.0
    %381 = vmatpush1.msra.mxu0 0.0
    %382 = vmatprep.subr.mxu0 0.0
    %383 = vmatpush1.msra.mxu0 0.0
    %384 = vmatprep.subr.mxu0 0.0
    %385 = vmatpush1.msra.mxu0 0.0
    %386 = vmatprep.subr.mxu0 0.0
    %387 = vmatpush1.msra.mxu0 0.0
    %388 = vmatprep.subr.mxu0 0.0
    %389 = vmatpush1.msra.mxu0 0.0
    %390 = vmatprep.subr.mxu0 0.0
    %391 = vmatpush1.msra.mxu0 0.0
    %392 = vmatprep.subr.mxu0 0.0
    %393 = vmatpush1.msra.mxu0 0.0
    %394 = vmatprep.subr.mxu0 0.0
    %395 = vmatpush1.msra.mxu0 0.0
    %396 = vmatprep.subr.mxu0 0.0
    %397 = vmatpush1.msra.mxu0 0.0
    %398 = vmatprep.subr.mxu0 0.0
    %399 = vmatpush1.msra.mxu0 0.0
    %400 = vmatprep.subr.mxu0 0.0
    %401 = vmatpush1.msra.mxu0 0.0
    %402 = vmatprep.subr.mxu0 0.0
    %403 = vmatpush1.msra.mxu0 0.0
    %404 = vmatprep.subr.mxu0 0.0
    %405 = vmatpush1.msra.mxu0 0.0
    %406 = vmatprep.subr.mxu0 0.0
    %407 = vmatpush1.msra.mxu0 0.0
    %408 = vmatprep.subr.mxu0 0.0
    %409 = vmatpush1.msra.mxu0 0.0
    %410 = vmatprep.subr.mxu0 0.0
    %411 = vmatpush1.msra.mxu0 0.0
    %412 = vmatprep.mubr.f32.mxu0 0.0
    %413 = vmatmul.mubr.f32.gmra.mrb[0].mxu0 %v325
    %v414 = vpop.f32.mrb[0].mxu0
    %v415 = vadd.f32 %v347, %v414
    %v416 = vpop.f32.mrb[0].mxu0
    %417 = vdwg.mxu0
    %418 = vst [vmem:[#allocation8] sm:$0x3] %v415
    // Predicated region
    $region30: #{qnet_forward.1} parent=1 // pred_check
      _
    $region31: #{qnet_forward.1} parent=1 // pred_check_branch
      %420 = sbr.rel (0) target = $region33
    $region32: #{qnet_forward.1} parent=1 // pred_region
      %s422 = ssub.s32 32, 32
      %423 = vsyncadd [#allocation4], %s422
      %s425 = sshll.u32 [#allocation8], 4
      %s426 = int_to_ptr.vmem [resolvable:$true] %s425
      %428 = dma.vmem_to_hbm [thread:$0]  %s426, 32, %s4, [#allocation4]
    $region33: #{qnet_forward.1} parent=1 // pred_fallthru
      _
    // Predicated region
    $region34: #{qnet_forward.1} parent=1 // pred_check
      _
    $region35: #{qnet_forward.1} parent=1 // pred_check_branch
      %430 = sbr.rel (0) target = $region37
    $region36: #{qnet_forward.1} parent=1 // pred_region
      %431 = dma.done [#allocation4], 32
    $region37: #{qnet_forward.1} parent=1 // pred_fallthru
      _
    %432 = vsyncpa [#allocation3], 1
    %433 = vsyncpa [#allocation6], 1
    %434 = vsyncpa [#allocation4], 1

</llo_original>
